<compile_context>
chip_gen: v7x
topology: tpu7x:2x2x1
jax: 0.10.0
libtpu: 0.0.40
codegen_flags: <defaults>
</compile_context>

<pallas_src>
import jax
import jax.numpy as jnp
from jax.experimental import pallas as pl
from jax.experimental.pallas import tpu as pltpu

_LANE = 128
_SUBLANE = 8


def _round_up(n, m):
    return ((n + m - 1) // m) * m


def _cls_kernel(x_ref, w1_ref, b1_ref, w2_ref, b2_ref, o_ref):
    # Layer 1: (tb, in_dim) @ (in_dim, hid_pad) -> (tb, hid_pad); f32 accumulation on MXU.
    x = x_ref[...].astype(jnp.bfloat16)
    h = jnp.dot(x, w1_ref[...], preferred_element_type=jnp.float32)
    h = h + b1_ref[...]                       # b1: (1, hid_pad), broadcasts over batch
    # LeakyReLU (PyTorch default negative_slope = 0.01), f32 on the VPU.
    h = jnp.where(h > 0, h, 0.01 * h)
    # Dropout(p) -> identity in eval mode.
    # TODO(synk): training-mode Dropout would need pltpu.prng_seed/prng_random_bits + 1/(1-p) scaling.
    # Layer 2: (tb, hid_pad) @ (hid_pad, ncls_pad) -> (tb, ncls_pad); f32 accumulation.
    out = jnp.dot(h.astype(jnp.bfloat16), w2_ref[...], preferred_element_type=jnp.float32)
    out = out + b2_ref[...]                   # b2: (1, ncls_pad)
    o_ref[...] = out.astype(o_ref.dtype)


def cls_forward(x, w1, b1, w2, b2, *, tb=None):
    """x: (B, in_dim); w1: (in_dim, hid_dim); b1: (hid_dim,);
    w2: (hid_dim, num_cls); b2: (num_cls,).  Returns (B, num_cls)."""
    B, in_dim = x.shape
    hid_dim = w1.shape[1]
    num_cls = w2.shape[1]

    # ---- batch tile: sublane-aligned, as large as reasonable, >= 2 grid steps if possible ----
    if tb is None:
        tb = 256
    tb = max(_SUBLANE, _round_up(min(tb, _round_up(B, _SUBLANE)), _SUBLANE))
    if _round_up(B, tb) // tb < 2 and tb >= 2 * _SUBLANE:
        tb = _round_up(tb // 2, _SUBLANE)     # split so both megacore TCs get work
    B_pad = _round_up(B, tb)

    # ---- pad batch / hidden / class dims; convert weights to bf16 once ----
    hid_pad = _round_up(hid_dim, _LANE)
    ncls_pad = _round_up(num_cls, _LANE)

    xp = x if B_pad == B else jnp.pad(x, ((0, B_pad - B), (0, 0)))
    w1p = jnp.pad(w1, ((0, 0), (0, hid_pad - hid_dim))).astype(jnp.bfloat16)
    w2p = jnp.pad(w2, ((0, hid_pad - hid_dim), (0, ncls_pad - num_cls))).astype(jnp.bfloat16)
    b1p = jnp.pad(b1, (0, hid_pad - hid_dim)).astype(jnp.float32).reshape(1, hid_pad)
    b2p = jnp.pad(b2, (0, ncls_pad - num_cls)).astype(jnp.float32).reshape(1, ncls_pad)

    # ---- explicit VMEM budget: resident weights/biases + double-buffered x/out tiles ----
    vmem_bytes = (
        w1p.size * 2 + w2p.size * 2           # resident bf16 weights
        + b1p.size * 4 + b2p.size * 4         # resident f32 biases
        + 2 * tb * in_dim * x.dtype.itemsize  # double-buffered x tiles
        + 2 * tb * ncls_pad * 4               # double-buffered output tiles
    )
    vmem_limit = int(min(max(4 * vmem_bytes, 8 << 20), 48 << 20))

    out_padded = pl.pallas_call(
        _cls_kernel,
        out_shape=jax.ShapeDtypeStruct((B_pad, ncls_pad), x.dtype),
        grid_spec=pl.GridSpec(
            grid=(B_pad // tb,),
            in_specs=[
                pl.BlockSpec((tb, in_dim), lambda i: (i, 0)),         # x tile (streamed)
                pl.BlockSpec((in_dim, hid_pad), lambda i: (0, 0)),    # W1 (resident)
                pl.BlockSpec((1, hid_pad), lambda i: (0, 0)),         # b1 (resident)
                pl.BlockSpec((hid_pad, ncls_pad), lambda i: (0, 0)),  # W2 (resident)
                pl.BlockSpec((1, ncls_pad), lambda i: (0, 0)),        # b2 (resident)
            ],
            out_specs=pl.BlockSpec((tb, ncls_pad), lambda i: (i, 0)),
        ),
        compiler_params=pltpu.CompilerParams(
            dimension_semantics=("parallel",),
            vmem_limit_bytes=vmem_limit,
        ),
    )(xp, w1p, b1p, w2p, b2p)

    return out_padded[:B, :num_cls]


def _init_linear(key, fan_in, fan_out):
    """Deterministic PyTorch-style init: U(-1/sqrt(fan_in), 1/sqrt(fan_in))."""
    kw, kb = jax.random.split(key)
    bound = 1.0 / jnp.sqrt(fan_in)
    # Stored pre-transposed: (fan_in, fan_out) so the kernel computes x @ W.
    w = jax.random.uniform(kw, (fan_in, fan_out), jnp.float32, -bound, bound)
    b = jax.random.uniform(kb, (fan_out,), jnp.float32, -bound, bound)
    return w, b


if __name__ == "__main__":
    # Small shapes consistent with the module's forward: x is (batch, in_dim).
    batch, in_dim, hid_dim, num_cls = 16, 32, 64, 8

    key = jax.random.PRNGKey(0)
    kx, k1, k2 = jax.random.split(key, 3)

    x = jax.random.normal(kx, (batch, in_dim), jnp.float32)
    w1, b1 = _init_linear(k1, in_dim, hid_dim)
    w2, b2 = _init_linear(k2, hid_dim, num_cls)

    out = cls_forward(x, w1, b1, w2, b2)
    out = jax.block_until_ready(out)

    # Pure-JAX f32 reference (eval-mode dropout). Kernel uses bf16 MXU operands with
    # f32 accumulation, so compare with a modest tolerance.
    h_ref = x @ w1 + b1
    h_ref = jnp.where(h_ref > 0, h_ref, 0.01 * h_ref)
    ref = h_ref @ w2 + b2
    assert out.shape == (batch, num_cls)
    assert jnp.allclose(out, ref, atol=2e-2, rtol=2e-2), float(jnp.max(jnp.abs(out - ref)))

    print("KERNEL_OK")
</pallas_src>

<mosaic_0001>
module attributes {stable_mosaic.version = 11 : i64} {
  func.func @_cls_kernel(%arg0: i32, %arg1: memref<8x32xf32, #tpu.memory_space<vmem>>, %arg2: memref<32x128xbf16, #tpu.memory_space<vmem>>, %arg3: memref<1x128xf32, #tpu.memory_space<vmem>>, %arg4: memref<128x128xbf16, #tpu.memory_space<vmem>>, %arg5: memref<1x128xf32, #tpu.memory_space<vmem>>, %arg6: memref<8x128xf32, #tpu.memory_space<vmem>>) attributes {dimension_semantics = [#tpu.dimension_semantics<parallel>], iteration_bounds = array<i64: 2>, scalar_prefetch = 0 : i64, scratch_operands = 0 : i64, tpu.core_type = #tpu.core_type<tc>, window_params = [{transform_indices = @transform_0, window_bounds = array<i64: 8, 32>}, {pipeline_mode = #tpu.pipeline_mode<synchronous>, transform_indices = @transform_1, window_bounds = array<i64: 32, 128>}, {pipeline_mode = #tpu.pipeline_mode<synchronous>, transform_indices = @transform_2, window_bounds = array<i64: 1, 128>}, {pipeline_mode = #tpu.pipeline_mode<synchronous>, transform_indices = @transform_3, window_bounds = array<i64: 128, 128>}, {pipeline_mode = #tpu.pipeline_mode<synchronous>, transform_indices = @transform_4, window_bounds = array<i64: 1, 128>}, {transform_indices = @transform_5, window_bounds = array<i64: 8, 128>}]} {
    %c0 = arith.constant 0 : index
    %c0_0 = arith.constant 0 : index
    %0 = vector.load %arg1[%c0, %c0_0] : memref<8x32xf32, #tpu.memory_space<vmem>>, vector<8x32xf32>
    %1 = arith.truncf %0 : vector<8x32xf32> to vector<8x32xbf16>
    %c0_1 = arith.constant 0 : index
    %c0_2 = arith.constant 0 : index
    %2 = vector.load %arg2[%c0_1, %c0_2] : memref<32x128xbf16, #tpu.memory_space<vmem>>, vector<32x128xbf16>
    %cst = arith.constant dense<0.000000e+00> : vector<8x128xf32>
    %3 = tpu.matmul %1, %2, %cst {dimension_numbers = #tpu.dot_dimension_numbers<[1], [0], [0], [1], [0, 0, 1, 1], [], []>} : vector<8x32xbf16>, vector<32x128xbf16>, vector<8x128xf32> -> vector<8x128xf32>
    %c0_3 = arith.constant 0 : index
    %c0_4 = arith.constant 0 : index
    %4 = vector.load %arg3[%c0_3, %c0_4] : memref<1x128xf32, #tpu.memory_space<vmem>>, vector<1x128xf32>
    %5 = vector.broadcast %4 : vector<1x128xf32> to vector<8x128xf32>
    %6 = arith.addf %3, %5 : vector<8x128xf32>
    %cst_5 = arith.constant 0.000000e+00 : f32
    %7 = vector.broadcast %cst_5 : f32 to vector<8x128xf32>
    %8 = arith.cmpf ogt, %6, %7 : vector<8x128xf32>
    %cst_6 = arith.constant 0.00999999977 : f32
    %9 = vector.broadcast %cst_6 : f32 to vector<8x128xf32>
    %10 = arith.mulf %9, %6 : vector<8x128xf32>
    %11 = arith.select %8, %6, %10 : vector<8x128xi1>, vector<8x128xf32>
    %12 = arith.truncf %11 : vector<8x128xf32> to vector<8x128xbf16>
    %c0_7 = arith.constant 0 : index
    %c0_8 = arith.constant 0 : index
    %13 = vector.load %arg4[%c0_7, %c0_8] : memref<128x128xbf16, #tpu.memory_space<vmem>>, vector<128x128xbf16>
    %cst_9 = arith.constant dense<0.000000e+00> : vector<8x128xf32>
    %14 = tpu.matmul %12, %13, %cst_9 {dimension_numbers = #tpu.dot_dimension_numbers<[1], [0], [0], [1], [0, 0, 1, 1], [], []>} : vector<8x128xbf16>, vector<128x128xbf16>, vector<8x128xf32> -> vector<8x128xf32>
    %c0_10 = arith.constant 0 : index
    %c0_11 = arith.constant 0 : index
    %15 = vector.load %arg5[%c0_10, %c0_11] : memref<1x128xf32, #tpu.memory_space<vmem>>, vector<1x128xf32>
    %16 = vector.broadcast %15 : vector<1x128xf32> to vector<8x128xf32>
    %17 = arith.addf %14, %16 : vector<8x128xf32>
    %c0_12 = arith.constant 0 : index
    %c0_13 = arith.constant 0 : index
    %18 = vector.load %arg6[%c0_12, %c0_13] : memref<8x128xf32, #tpu.memory_space<vmem>>, vector<8x128xf32>
    tpu.vector_store %arg6[%c0_12, %c0_13], %17 {strides = array<i32>} : memref<8x128xf32, #tpu.memory_space<vmem>>, vector<8x128xf32>,
    return
  }
  func.func @transform_0(%arg0: i32) -> (i32, i32) {
    %c0_i32 = arith.constant 0 : i32
    %c0_i32_0 = arith.constant 0 : i32
    return %arg0, %c0_i32 : i32, i32
  }
  func.func @transform_1(%arg0: i32) -> (i32, i32) {
    %c0_i32 = arith.constant 0 : i32
    %c0_i32_0 = arith.constant 0 : i32
    %c0_i32_1 = arith.constant 0 : i32
    return %c0_i32, %c0_i32_0 : i32, i32
  }
  func.func @transform_2(%arg0: i32) -> (i32, i32) {
    %c0_i32 = arith.constant 0 : i32
    %c0_i32_0 = arith.constant 0 : i32
    %c0_i32_1 = arith.constant 0 : i32
    return %c0_i32, %c0_i32_0 : i32, i32
  }
  func.func @transform_3(%arg0: i32) -> (i32, i32) {
    %c0_i32 = arith.constant 0 : i32
    %c0_i32_0 = arith.constant 0 : i32
    %c0_i32_1 = arith.constant 0 : i32
    return %c0_i32, %c0_i32_0 : i32, i32
  }
  func.func @transform_4(%arg0: i32) -> (i32, i32) {
    %c0_i32 = arith.constant 0 : i32
    %c0_i32_0 = arith.constant 0 : i32
    %c0_i32_1 = arith.constant 0 : i32
    return %c0_i32, %c0_i32_0 : i32, i32
  }
  func.func @transform_5(%arg0: i32) -> (i32, i32) {
    %c0_i32 = arith.constant 0 : i32
    %c0_i32_0 = arith.constant 0 : i32
    return %arg0, %c0_i32 : i32, i32
  }
}

</mosaic_0001>

<llo_original>
// kernel: tpu_custom_call.1
$region0: #{tpu_custom_call.1}
  #allocation0 [shape = 'u32[]', space=smem, size = 0x4, offset = 0x4, fixed_abs, tag = 'smem constant byte address 0x4 - core index']
  #allocation1 [shape = 'u32[144,128]{1,0:T(1,128)}', space=vmem, size = 0x12000, scoped, tag = 'internal scratch']
  %s0 = inlined_call_operand.hbm [shape: f32[16,32], index: 0, kind: input, shape index: {}]
  %s1 = inlined_call_operand.hbm [shape: bf16[32,128], index: 1, kind: input, shape index: {}]
  %s2 = inlined_call_operand.vmem [shape: f32[1,128], index: 2, kind: input, shape index: {}]
  %s3 = inlined_call_operand.hbm [shape: bf16[128,128], index: 3, kind: input, shape index: {}]
  %s4 = inlined_call_operand.vmem [shape: f32[1,128], index: 4, kind: input, shape index: {}]
  %s5 = inlined_call_operand.hbm [shape: f32[16,128], index: 5, kind: output, shape index: {}]
  %s6 = sld [smem:[#allocation0]]
  $region65: #{tpu_custom_call.1} parent=0
    _
  %s8 = ssub.s32 1, %s6
  %s9 = scalar_select 0, %s8, %s6
  $region1: #{tpu_custom_call.1} parent=0
    #allocation2 [shape = 'u8[8192]{0}', space=vmem, size = 0x2000, scoped, tag = 'input window, operand 0']
    #allocation3 [shape = 's32[2]{0}', space=sflag, size = 0x8, scoped, tag = 'scoped memory for tpu_custom_call.1']
    #allocation4 [shape = 's32[2]{0}', space=sflag, size = 0x8, scoped, tag = 'scoped memory for tpu_custom_call.1']
    #allocation5 [shape = 'u8[8192]{0}', space=vmem, size = 0x2000, scoped, tag = 'input window, operand 1, single buffered']
    #allocation6 [shape = 's32[1]{0}', space=sflag, size = 0x4, scoped, tag = 'scoped memory for tpu_custom_call.1']
    #allocation7 [shape = 'u8[32768]{0}', space=vmem, size = 0x8000, scoped, tag = 'input window, operand 3, single buffered']
    #allocation8 [shape = 'u8[8192]{0}', space=vmem, size = 0x2000, scoped, tag = 'output window, operand 0']
    %10 = vsyncpa [#allocation3], 0
    %s11 = scalar_lea.sflag [#allocation3], 1
    %12 = vsyncpa %s11, 0
    %13 = vsyncpa [#allocation6], 0
    %14 = vsyncpa [#allocation4], 0
    %s15 = scalar_lea.sflag [#allocation4], 1
    %16 = vsyncpa %s15, 0
    loop: start=0, step=1, limit=4
    $region2: #{tpu_custom_call.1} parent=1 // loop_pre_header
      _
    $region3: #{tpu_custom_call.1} parent=1 // loop_header
      %s18 = sphi 0, %s22
      %p19 = scmp.ge.s32.totalorder %s18, 4
      %s28 = sphi 0, %s30
      %s31 = sphi 0, %s28
      %s32 = sphi 0, %s31
      %s48 = sphi 0, %s32
      %s52 = sphi 0, %s52
      %s54 = sphi 0, %s52
      %s55 = sphi 0, %s54
      %s69 = sphi 0, %s55
      %s73 = sphi 0, %s73
      %s75 = sphi 0, %s73
      %s76 = sphi 0, %s75
      %s90 = sphi 0, %s76
      %s94 = sphi 0, %s94
      %s96 = sphi 0, %s94
      %s97 = sphi 0, %s96
      %s111 = sphi 0, %s97
      %s115 = sphi 0, %s115
      %s117 = sphi 0, %s115
      %s118 = sphi 0, %s117
      %s132 = sphi 0, %s118
      %s138 = sphi 0, %s140
      %s141 = sphi 0, %s138
      %s142 = sphi 0, %s141
      %s158 = sphi 0, %s142
    $region4: #{tpu_custom_call.1} parent=1 // loop_header_branch
      %21 = sbr.rel (%p19) target = $region8
    $region5: #{tpu_custom_call.1} parent=1 // loop_body
      %s23 = ssub.s32 %s18, 1
      %s24 = ssub.s32 %s18, 2
      %s25 = sadd.s32 %s18, 1
      %s26 = ssub.s32 %s18, %s25
      %p27 = scmp.eq.s32.totalorder %s26, 0
      %s29 = sadd.s32 %s28, 1
      %s30 = scalar_select %p27, %s28, %s29
      %p33 = pneg %p27
      %p34 = scmp.eq.s32.totalorder %s18, 1
      %p35 = por %p33, %p34
      %p36 = scmp.ne.s32.totalorder %s28, %s31
      %p37 = scmp.eq.s32.totalorder %s18, 0
      %p38 = por %p36, %p37
      %p39 = scmp.ne.s32.totalorder %s28, %s31
      %p40 = scmp.eq.s32.totalorder %s23, 1
      %p41 = por %p39, %p40
      %p42 = scmp.ne.s32.totalorder %s31, %s32
      %p43 = scmp.eq.s32.totalorder %s23, 0
      %p44 = por %p42, %p43
      %p45 = scmp.ne.s32.totalorder %s31, %s32
      %p46 = scmp.eq.s32.totalorder %s24, 1
      %p47 = por %p45, %p46
      %p49 = scmp.ne.s32.totalorder %s32, %s48
      %p50 = scmp.eq.s32.totalorder %s24, 0
      %p51 = por %p49, %p50
      %s53 = sadd.s32 %s52, 1
      %p56 = scmp.eq.s32.totalorder %s18, 1
      %p57 = scmp.ne.s32.totalorder %s52, %s54
      %p58 = scmp.eq.s32.totalorder %s18, 0
      %p59 = por %p57, %p58
      %p60 = scmp.ne.s32.totalorder %s52, %s54
      %p61 = scmp.eq.s32.totalorder %s23, 1
      %p62 = por %p60, %p61
      %p63 = scmp.ne.s32.totalorder %s54, %s55
      %p64 = scmp.eq.s32.totalorder %s23, 0
      %p65 = por %p63, %p64
      %p66 = scmp.ne.s32.totalorder %s54, %s55
      %p67 = scmp.eq.s32.totalorder %s24, 1
      %p68 = por %p66, %p67
      %p70 = scmp.ne.s32.totalorder %s55, %s69
      %p71 = scmp.eq.s32.totalorder %s24, 0
      %p72 = por %p70, %p71
      %s74 = sadd.s32 %s73, 1
      %p77 = scmp.eq.s32.totalorder %s18, 1
      %p78 = scmp.ne.s32.totalorder %s73, %s75
      %p79 = scmp.eq.s32.totalorder %s18, 0
      %p80 = por %p78, %p79
      %p81 = scmp.ne.s32.totalorder %s73, %s75
      %p82 = scmp.eq.s32.totalorder %s23, 1
      %p83 = por %p81, %p82
      %p84 = scmp.ne.s32.totalorder %s75, %s76
      %p85 = scmp.eq.s32.totalorder %s23, 0
      %p86 = por %p84, %p85
      %p87 = scmp.ne.s32.totalorder %s75, %s76
      %p88 = scmp.eq.s32.totalorder %s24, 1
      %p89 = por %p87, %p88
      %p91 = scmp.ne.s32.totalorder %s76, %s90
      %p92 = scmp.eq.s32.totalorder %s24, 0
      %p93 = por %p91, %p92
      %s95 = sadd.s32 %s94, 1
      %p98 = scmp.eq.s32.totalorder %s18, 1
      %p99 = scmp.ne.s32.totalorder %s94, %s96
      %p100 = scmp.eq.s32.totalorder %s18, 0
      %p101 = por %p99, %p100
      %p102 = scmp.ne.s32.totalorder %s94, %s96
      %p103 = scmp.eq.s32.totalorder %s23, 1
      %p104 = por %p102, %p103
      %p105 = scmp.ne.s32.totalorder %s96, %s97
      %p106 = scmp.eq.s32.totalorder %s23, 0
      %p107 = por %p105, %p106
      %p108 = scmp.ne.s32.totalorder %s96, %s97
      %p109 = scmp.eq.s32.totalorder %s24, 1
      %p110 = por %p108, %p109
      %p112 = scmp.ne.s32.totalorder %s97, %s111
      %p113 = scmp.eq.s32.totalorder %s24, 0
      %p114 = por %p112, %p113
      %s116 = sadd.s32 %s115, 1
      %p119 = scmp.eq.s32.totalorder %s18, 1
      %p120 = scmp.ne.s32.totalorder %s115, %s117
      %p121 = scmp.eq.s32.totalorder %s18, 0
      %p122 = por %p120, %p121
      %p123 = scmp.ne.s32.totalorder %s115, %s117
      %p124 = scmp.eq.s32.totalorder %s23, 1
      %p125 = por %p123, %p124
      %p126 = scmp.ne.s32.totalorder %s117, %s118
      %p127 = scmp.eq.s32.totalorder %s23, 0
      %p128 = por %p126, %p127
      %p129 = scmp.ne.s32.totalorder %s117, %s118
      %p130 = scmp.eq.s32.totalorder %s24, 1
      %p131 = por %p129, %p130
      %p133 = scmp.ne.s32.totalorder %s118, %s132
      %p134 = scmp.eq.s32.totalorder %s24, 0
      %p135 = por %p133, %p134
      %s136 = ssub.s32 %s18, %s25
      %p137 = scmp.eq.s32.totalorder %s136, 0
      %s139 = sadd.s32 %s138, 1
      %s140 = scalar_select %p137, %s138, %s139
      %p143 = pneg %p137
      %p144 = scmp.eq.s32.totalorder %s18, 1
      %p145 = por %p143, %p144
      %p146 = scmp.ne.s32.totalorder %s138, %s141
      %p147 = scmp.eq.s32.totalorder %s18, 0
      %p148 = por %p146, %p147
      %p149 = scmp.ne.s32.totalorder %s138, %s141
      %p150 = scmp.eq.s32.totalorder %s23, 1
      %p151 = por %p149, %p150
      %p152 = scmp.ne.s32.totalorder %s141, %s142
      %p153 = scmp.eq.s32.totalorder %s23, 0
      %p154 = por %p152, %p153
      %p155 = scmp.ne.s32.totalorder %s141, %s142
      %p156 = scmp.eq.s32.totalorder %s24, 1
      %p157 = por %p155, %p156
      %p159 = scmp.ne.s32.totalorder %s142, %s158
      %p160 = scmp.eq.s32.totalorder %s24, 0
      %p161 = por %p159, %p160
      %p162 = scmp.le.s32.totalorder 1, %s18
      %p163 = scmp.lt.s32.totalorder %s18, 3
      %p164 = pnand %p162, %p163
      %p165 = pneg %p164
      // Predicated region
      $region9: #{tpu_custom_call.1} parent=5 // pred_check
        _
      $region10: #{tpu_custom_call.1} parent=5 // pred_check_branch
        %167 = sbr.rel (%p164) target = $region12
      $region11: #{tpu_custom_call.1} parent=5 // pred_region
        %s168 = ssub.s32 %s18, 1
        // Predicated region
        $region13: #{tpu_custom_call.1} parent=11 // pred_check
          %p169 = pneg %p65
        $region14: #{tpu_custom_call.1} parent=11 // pred_check_branch
          %171 = sbr.rel (%p169) target = $region16
        $region15: #{tpu_custom_call.1} parent=11 // pred_region
          %s173 = ssub.s32 256, 256
          %174 = vsyncadd [#allocation6], %s173
          %s175 = sshll.u32 [#allocation5], 4
          %s176 = int_to_ptr.vmem [resolvable:$true] %s175
          %181 = dma.hbm_to_vmem [thread:$0]  %s1, 256, %s176, [#allocation6], 64, 64, 4
        $region16: #{tpu_custom_call.1} parent=11 // pred_fallthru
          _
        // Predicated region
        $region17: #{tpu_custom_call.1} parent=11 // pred_check
          %p182 = pneg %p86
        $region18: #{tpu_custom_call.1} parent=11 // pred_check_branch
          %184 = sbr.rel (%p182) target = $region20
        $region19: #{tpu_custom_call.1} parent=11 // pred_region
          _
        $region20: #{tpu_custom_call.1} parent=11 // pred_fallthru
          _
        // Predicated region
        $region21: #{tpu_custom_call.1} parent=11 // pred_check
          %p185 = pneg %p107
        $region22: #{tpu_custom_call.1} parent=11 // pred_check_branch
          %187 = sbr.rel (%p185) target = $region24
        $region23: #{tpu_custom_call.1} parent=11 // pred_region
          %s189 = ssub.s32 1024, 1024
          %190 = vsyncadd [#allocation6], %s189
          %s191 = sshll.u32 [#allocation7], 4
          %s192 = int_to_ptr.vmem [resolvable:$true] %s191
          %197 = dma.hbm_to_vmem [thread:$0]  %s3, 1024, %s192, [#allocation6], 64, 64, 4
        $region24: #{tpu_custom_call.1} parent=11 // pred_fallthru
          _
        // Predicated region
        $region25: #{tpu_custom_call.1} parent=11 // pred_check
          %p198 = pneg %p128
        $region26: #{tpu_custom_call.1} parent=11 // pred_check_branch
          %200 = sbr.rel (%p198) target = $region28
        $region27: #{tpu_custom_call.1} parent=11 // pred_region
          _
        $region28: #{tpu_custom_call.1} parent=11 // pred_fallthru
          _
      $region12: #{tpu_custom_call.1} parent=5 // pred_fallthru
        _
      %p201 = scmp.lt.s32.totalorder %s18, 2
      // Predicated region
      $region29: #{tpu_custom_call.1} parent=5 // pred_check
        %p202 = pneg %p201
      $region30: #{tpu_custom_call.1} parent=5 // pred_check_branch
        %204 = sbr.rel (%p202) target = $region32
      $region31: #{tpu_custom_call.1} parent=5 // pred_region
        // Predicated region
        $region33: #{tpu_custom_call.1} parent=31 // pred_check
          %p205 = pneg %p38
        $region34: #{tpu_custom_call.1} parent=31 // pred_check_branch
          %207 = sbr.rel (%p205) target = $region36
        $region35: #{tpu_custom_call.1} parent=31 // pred_region
          %s208 = sand.u32 %s28, 1
          %s209 = scalar_lea.sflag [#allocation3], %s208
          %s210 = sand.u32 %s28, 1
          %s211 = smul.addr %s210, 8
          %s212 = scalar_lea.vmem [#allocation2], %s211
          %s214 = ssub.s32 128, 128
          %215 = vsyncadd %s209, %s214
          %s216 = smul.addr %s18, 128
          %s217 = scalar_lea.hbm %s0, %s216
          %s219 = sshll.u32 %s212, 4
          %s220 = int_to_ptr.vmem [resolvable:$true] %s219
          %222 = dma.hbm_to_vmem [thread:$0]  %s217, 128, %s220, %s209
        $region36: #{tpu_custom_call.1} parent=31 // pred_fallthru
          _
      $region32: #{tpu_custom_call.1} parent=5 // pred_fallthru
        _
      %p223 = scmp.le.s32.totalorder 1, %s18
      %p224 = scmp.lt.s32.totalorder %s18, 3
      %p225 = pnand %p223, %p224
      %p226 = pneg %p225
      // Predicated region
      $region37: #{tpu_custom_call.1} parent=5 // pred_check
        _
      $region38: #{tpu_custom_call.1} parent=5 // pred_check_branch
        %228 = sbr.rel (%p225) target = $region40
      $region39: #{tpu_custom_call.1} parent=5 // pred_region
        %s229 = ssub.s32 %s18, 1
        %s230 = sand.u32 %s31, 1
        %s231 = scalar_lea.sflag [#allocation3], %s230
        %s232 = sand.u32 %s31, 1
        %s233 = smul.addr %s232, 8
        %s234 = scalar_lea.vmem [#allocation2], %s233
        // Predicated region
        $region41: #{tpu_custom_call.1} parent=39 // pred_check
          %p235 = pneg %p44
        $region42: #{tpu_custom_call.1} parent=39 // pred_check_branch
          %237 = sbr.rel (%p235) target = $region44
        $region43: #{tpu_custom_call.1} parent=39 // pred_region
          %238 = dma.done %s231, 128
        $region44: #{tpu_custom_call.1} parent=39 // pred_fallthru
          _
        // Predicated region
        $region45: #{tpu_custom_call.1} parent=39 // pred_check
          %p239 = pneg %p65
        $region46: #{tpu_custom_call.1} parent=39 // pred_check_branch
          %241 = sbr.rel (%p239) target = $region48
        $region47: #{tpu_custom_call.1} parent=39 // pred_region
          %242 = dma.done [#allocation6], 256
        $region48: #{tpu_custom_call.1} parent=39 // pred_fallthru
          _
        // Predicated region
        $region49: #{tpu_custom_call.1} parent=39 // pred_check
          %p243 = pneg %p107
        $region50: #{tpu_custom_call.1} parent=39 // pred_check_branch
          %245 = sbr.rel (%p243) target = $region52
        $region51: #{tpu_custom_call.1} parent=39 // pred_region
          %246 = dma.done [#allocation6], 1024
        $region52: #{tpu_custom_call.1} parent=39 // pred_fallthru
          _
        %s247 = sand.u32 %s31, 1
        %s248 = scalar_lea.sflag [#allocation3], %s247
        %s249 = sand.u32 %s31, 1
        %s250 = smul.addr %s249, 8
        %s251 = scalar_lea.vmem [#allocation2], %s250
        %p252 = pneg %p44
        %p253 = pneg %p41
        %p254 = pneg %p65
        %p255 = pneg %p62
        %p256 = pneg %p86
        %p257 = pneg %p83
        %p258 = pneg %p107
        %p259 = pneg %p104
        %p260 = pneg %p128
        %p261 = pneg %p125
        %p262 = pneg %p154
        %p263 = pneg %p151
        %s264 = sand.u32 %s141, 1
        %s265 = scalar_lea.sflag [#allocation4], %s264
        %s266 = sand.u32 %s141, 1
        %s267 = smul.addr %s266, 8
        %s268 = scalar_lea.vmem [#allocation8], %s267
        %v270 = vld [vmem:[%s234] sm:$0xff]
        %v271 = vpack.c.bf16 %v270, %v270
        %v272 = vld [vmem:[#allocation5] sm:$0xf]
        %v273 = vld [vmem:[#allocation5 + $0x4] sm:$0xf]
        %v274 = vld [vmem:[#allocation5 + $0x8] sm:$0xf]
        %v275 = vld [vmem:[#allocation5 + $0xc] sm:$0xf]
        %v276 = vld [vmem:[%s2] sm:$0x1]
        %v278 = vlaneseq
        %v279 = vshrl.u32 %v278, 7
        %v280 = vsub.s32 0, %v279
        %v281 = vrot.slane %v276, %v280
        %v287 = vunpack.c.l.b16 %v272
        %v288 = vunpack.c.l.b16 %v273
        %v289 = vunpack.c.l.b16 %v274
        %v290 = vunpack.c.l.b16 %v275
        %v291 = vpack.c.b16 %v288, %v287
        %v292 = vpack.c.b16 %v290, %v289
        %vm295 = vcmask 261120
        %v297 = vsel %vm295, %v271, 0
        %299 = vmatprep.subr.bf16.mxu0 0
        %300 = vmatpush1.bf16.msra.mxu0 %v291
        %301 = vmatprep.subr.bf16.mxu0 0
        %302 = vmatpush1.bf16.msra.mxu0 %v292
        %303 = vmatprep.subr.bf16.mxu0 0
        %304 = vmatpush1.bf16.msra.mxu0 0
        %305 = vmatprep.subr.bf16.mxu0 0
        %306 = vmatpush1.bf16.msra.mxu0 0
        %307 = vmatprep.subr.bf16.mxu0 0
        %308 = vmatpush1.bf16.msra.mxu0 0
        %309 = vmatprep.subr.bf16.mxu0 0
        %310 = vmatpush1.bf16.msra.mxu0 0
        %311 = vmatprep.subr.bf16.mxu0 0
        %312 = vmatpush1.bf16.msra.mxu0 0
        %313 = vmatprep.subr.bf16.mxu0 0
        %314 = vmatpush1.bf16.msra.mxu0 0
        %315 = vmatprep.subr.bf16.mxu0 0
        %316 = vmatpush1.bf16.msra.mxu0 0
        %317 = vmatprep.subr.bf16.mxu0 0
        %318 = vmatpush1.bf16.msra.mxu0 0
        %319 = vmatprep.subr.bf16.mxu0 0
        %320 = vmatpush1.bf16.msra.mxu0 0
        %321 = vmatprep.subr.bf16.mxu0 0
        %322 = vmatpush1.bf16.msra.mxu0 0
        %323 = vmatprep.subr.bf16.mxu0 0
        %324 = vmatpush1.bf16.msra.mxu0 0
        %325 = vmatprep.subr.bf16.mxu0 0
        %326 = vmatpush1.bf16.msra.mxu0 0
        %327 = vmatprep.subr.bf16.mxu0 0
        %328 = vmatpush1.bf16.msra.mxu0 0
        %329 = vmatprep.subr.bf16.mxu0 0
        %330 = vmatpush1.bf16.msra.mxu0 0
        %331 = vmatprep.mubr.bf16.mxu0 0
        %332 = vmatmul.mubr.bf16.gmra.mrb[0].mxu0 %v297
        %v333 = vpop.f32.mrb[0].mxu0
        %v334 = vadd.f32 %v281, %v333
        %v335 = vpop.f32.mrb[0].mxu0
        %v336 = vpop.f32.mrb[0].mxu0
        %v337 = vpop.f32.mrb[0].mxu0
        %338 = vdwg.mxu0
        %vm339 = vcmp.gt.f32.partialorder %v334, 0.0
        %v340 = vmul.f32 %v334, 0.01
        %v341 = vsel %vm339, %v334, %v340
        %v342 = vpack.c.bf16 %v341, %v341
        %v343 = vld [vmem:[#allocation7] sm:$0xf]
        %v344 = vld [vmem:[#allocation7 + $0x4] sm:$0xf]
        %v345 = vld [vmem:[#allocation7 + $0x8] sm:$0xf]
        %v346 = vld [vmem:[#allocation7 + $0xc] sm:$0xf]
        %v347 = vld [vmem:[#allocation7 + $0x10] sm:$0xf]
        %v348 = vld [vmem:[#allocation7 + $0x14] sm:$0xf]
        %v349 = vld [vmem:[#allocation7 + $0x18] sm:$0xf]
        %v350 = vld [vmem:[#allocation7 + $0x1c] sm:$0xf]
        %v351 = vld [vmem:[#allocation7 + $0x20] sm:$0xf]
        %v352 = vld [vmem:[#allocation7 + $0x24] sm:$0xf]
        %v353 = vld [vmem:[#allocation7 + $0x28] sm:$0xf]
        %v354 = vld [vmem:[#allocation7 + $0x2c] sm:$0xf]
        %v355 = vld [vmem:[#allocation7 + $0x30] sm:$0xf]
        %v356 = vld [vmem:[#allocation7 + $0x34] sm:$0xf]
        %v357 = vld [vmem:[#allocation7 + $0x38] sm:$0xf]
        %v358 = vld [vmem:[#allocation7 + $0x3c] sm:$0xf]
        %v359 = vld [vmem:[%s4] sm:$0x1]
        %v361 = vlaneseq
        %v362 = vshrl.u32 %v361, 7
        %v363 = vsub.s32 0, %v362
        %v364 = vrot.slane %v359, %v363
        %v382 = vunpack.c.l.b16 %v343
        %v383 = vunpack.c.l.b16 %v344
        %v384 = vunpack.c.l.b16 %v345
        %v385 = vunpack.c.l.b16 %v346
        %v386 = vunpack.c.l.b16 %v347
        %v387 = vunpack.c.l.b16 %v348
        %v388 = vunpack.c.l.b16 %v349
        %v389 = vunpack.c.l.b16 %v350
        %v390 = vunpack.c.l.b16 %v351
        %v391 = vunpack.c.l.b16 %v352
        %v392 = vunpack.c.l.b16 %v353
        %v393 = vunpack.c.l.b16 %v354
        %v394 = vunpack.c.l.b16 %v355
        %v395 = vunpack.c.l.b16 %v356
        %v396 = vunpack.c.l.b16 %v357
        %v397 = vunpack.c.l.b16 %v358
        %v398 = vpack.c.b16 %v383, %v382
        %v399 = vpack.c.b16 %v385, %v384
        %v400 = vpack.c.b16 %v387, %v386
        %v401 = vpack.c.b16 %v389, %v388
        %v402 = vpack.c.b16 %v391, %v390
        %v403 = vpack.c.b16 %v393, %v392
        %v404 = vpack.c.b16 %v395, %v394
        %v405 = vpack.c.b16 %v397, %v396
        %414 = vmatprep.subr.bf16.mxu0 0
        %415 = vmatpush1.bf16.msra.mxu0 %v398
        %416 = vmatprep.subr.bf16.mxu0 0
        %417 = vmatpush1.bf16.msra.mxu0 %v399
        %418 = vmatprep.subr.bf16.mxu0 0
        %419 = vmatpush1.bf16.msra.mxu0 %v400
        %420 = vmatprep.subr.bf16.mxu0 0
        %421 = vmatpush1.bf16.msra.mxu0 %v401
        %422 = vmatprep.subr.bf16.mxu0 0
        %423 = vmatpush1.bf16.msra.mxu0 %v402
        %424 = vmatprep.subr.bf16.mxu0 0
        %425 = vmatpush1.bf16.msra.mxu0 %v403
        %426 = vmatprep.subr.bf16.mxu0 0
        %427 = vmatpush1.bf16.msra.mxu0 %v404
        %428 = vmatprep.subr.bf16.mxu0 0
        %429 = vmatpush1.bf16.msra.mxu0 %v405
        %430 = vmatprep.subr.bf16.mxu0 0
        %431 = vmatpush1.bf16.msra.mxu0 0
        %432 = vmatprep.subr.bf16.mxu0 0
        %433 = vmatpush1.bf16.msra.mxu0 0
        %434 = vmatprep.subr.bf16.mxu0 0
        %435 = vmatpush1.bf16.msra.mxu0 0
        %436 = vmatprep.subr.bf16.mxu0 0
        %437 = vmatpush1.bf16.msra.mxu0 0
        %438 = vmatprep.subr.bf16.mxu0 0
        %439 = vmatpush1.bf16.msra.mxu0 0
        %440 = vmatprep.subr.bf16.mxu0 0
        %441 = vmatpush1.bf16.msra.mxu0 0
        %442 = vmatprep.subr.bf16.mxu0 0
        %443 = vmatpush1.bf16.msra.mxu0 0
        %444 = vmatprep.subr.bf16.mxu0 0
        %445 = vmatpush1.bf16.msra.mxu0 0
        %446 = vmatprep.mubr.bf16.mxu0 0
        %447 = vmatmul.mubr.bf16.gmra.mrb[0].mxu0 %v342
        %v448 = vpop.f32.mrb[0].mxu0
        %v449 = vadd.f32 %v364, %v448
        %v450 = vpop.f32.mrb[0].mxu0
        %v451 = vpop.f32.mrb[0].mxu0
        %v452 = vpop.f32.mrb[0].mxu0
        %453 = vdwg.mxu0
        %454 = vst [vmem:[%s268] sm:$0xff] %v449
        %s455 = sand.u32 %s141, 1
        %s456 = scalar_lea.sflag [#allocation4], %s455
        %s457 = sand.u32 %s141, 1
        %s458 = smul.addr %s457, 8
        %s459 = scalar_lea.vmem [#allocation8], %s458
        // Predicated region
        $region53: #{tpu_custom_call.1} parent=39 // pred_check
          %p460 = pneg %p151
        $region54: #{tpu_custom_call.1} parent=39 // pred_check_branch
          %462 = sbr.rel (%p460) target = $region56
        $region55: #{tpu_custom_call.1} parent=39 // pred_region
          %s464 = ssub.s32 128, 128
          %465 = vsyncadd %s456, %s464
          %s466 = smul.addr %s23, 128
          %s467 = scalar_lea.hbm %s5, %s466
          %s469 = sshll.u32 %s459, 4
          %s470 = int_to_ptr.vmem [resolvable:$true] %s469
          %472 = dma.vmem_to_hbm [thread:$0]  %s470, 128, %s467, %s456
        $region56: #{tpu_custom_call.1} parent=39 // pred_fallthru
          _
      $region40: #{tpu_custom_call.1} parent=5 // pred_fallthru
        _
      %p473 = scmp.le.s32.totalorder 2, %s18
      // Predicated region
      $region57: #{tpu_custom_call.1} parent=5 // pred_check
        %p474 = pneg %p473
      $region58: #{tpu_custom_call.1} parent=5 // pred_check_branch
        %476 = sbr.rel (%p474) target = $region60
      $region59: #{tpu_custom_call.1} parent=5 // pred_region
        %s477 = ssub.s32 %s18, 2
        // Predicated region
        $region61: #{tpu_custom_call.1} parent=59 // pred_check
          %p478 = pneg %p157
        $region62: #{tpu_custom_call.1} parent=59 // pred_check_branch
          %480 = sbr.rel (%p478) target = $region64
        $region63: #{tpu_custom_call.1} parent=59 // pred_region
          %s481 = sand.u32 %s142, 1
          %s482 = scalar_lea.sflag [#allocation4], %s481
          %s483 = sand.u32 %s142, 1
          %s484 = smul.addr %s483, 8
          %s485 = scalar_lea.vmem [#allocation8], %s484
          %486 = dma.done %s482, 128
        $region64: #{tpu_custom_call.1} parent=59 // pred_fallthru
          _
      $region60: #{tpu_custom_call.1} parent=5 // pred_fallthru
        _
    $region6: #{tpu_custom_call.1} parent=1 // loop_footer
      %s22 = sadd.s32 1, %s18
    $region7: #{tpu_custom_call.1} parent=1 // loop_footer_branch
      %17 = sbr.rel target = $region3
    $region8: #{tpu_custom_call.1} parent=1 // loop_exit
      _
    %487 = vsyncpa [#allocation3], 1
    %s488 = scalar_lea.sflag [#allocation3], 1
    %489 = vsyncpa %s488, 1
    %490 = vsyncpa [#allocation6], 1
    %491 = vsyncpa [#allocation4], 1
    %s492 = scalar_lea.sflag [#allocation4], 1
    %493 = vsyncpa %s492, 1

</llo_original>
